<compile_context>
chip_gen: v7x
topology: tpu7x:2x2x1
jax: 0.10.0
libtpu: 0.0.40
codegen_flags: <defaults>
</compile_context>

<pallas_src>
import functools

import jax
import jax.numpy as jnp
from jax import lax
from jax.experimental import pallas as pl
from jax.experimental.pallas import tpu as pltpu


_HAS_KERNEL_RNG = hasattr(pltpu, "prng_seed") and hasattr(pltpu, "stateful_normal")


def _round_up(x, m):
    return ((x + m - 1) // m) * m


def _cdiv(a, b):
    return -(-a // b)


def _vae_kernel(training, use_rng, lat_off, latent_dim, *args):
    """Full VAE forward on one (tile_n, in_dim) batch tile.

    Writes ONE packed (tile_n, slab_w) f32 slab:
      lanes [0, lat_off)                    decoder output
      lanes [lat_off, lat_off+latent_dim)   mu
      lanes [.., lat_off+2*latent_dim)      log_var
      remaining lanes                       exact zeros
    """
    if training and not use_rng:
        (seed_ref, x_ref, eps_ref,
         w1, b1, w2, b2, wmv, bmv, wrep, brep,
         wd1, bd1, wd2, bd2, wd3, bd3, out_ref) = args
    else:
        (seed_ref, x_ref,
         w1, b1, w2, b2, wmv, bmv, wrep, brep,
         wd1, bd1, wd2, bd2, wd3, bd3, out_ref) = args
        eps_ref = None

    mm = w1.dtype  # bf16 (or f32 if requested)

    # encoder: Linear(in_dim, 64) + ReLU, Linear(64, 128) + ReLU
    x = x_ref[...].astype(mm)                    # cast in-kernel (free VPU work)
    h = jnp.dot(x, w1[...], preferred_element_type=jnp.float32) + b1[...]
    h = jnp.maximum(h, 0.0).astype(mm)
    h = jnp.dot(h, w2[...], preferred_element_type=jnp.float32) + b2[...]
    h = jnp.maximum(h, 0.0).astype(mm)

    # fused fc_mu | fc_var, columns already placed at their final output lanes.
    mv = jnp.dot(h, wmv[...], preferred_element_type=jnp.float32) + bmv[...]

    if training:
        # log_var re-computed with its columns placed at the *mu* lanes
        # (exact zeros elsewhere) so reparameterization is a pure per-lane op.
        lv = jnp.dot(h, wrep[...], preferred_element_type=jnp.float32) + brep[...]
        if use_rng:
            pltpu.prng_seed(seed_ref[0] + pl.program_id(0))
            eps = pltpu.stateful_normal(mv.shape, jnp.float32)
            lane = lax.broadcasted_iota(jnp.int32, mv.shape, 1)
            mu_lane = (lane >= lat_off) & (lane < lat_off + latent_dim)
            eps = jnp.where(mu_lane, eps, 0.0)
        else:
            eps = eps_ref[...].astype(jnp.float32)  # zero outside the mu lanes
        # Outside the mu lanes: lv == 0 -> exp == 1, eps == 0 -> no contribution.
        z = mv + eps * jnp.exp(0.5 * lv)
    else:
        z = mv

    # decoder: Linear(latent,128)+ReLU, Linear(128,64)+ReLU, Linear(64,out_dim).
    # wd1 has nonzero rows only at [lat_off, lat_off+latent_dim): the log_var /
    # padding lanes carried along in z are inert.
    z = z.astype(mm)
    d = jnp.dot(z, wd1[...], preferred_element_type=jnp.float32) + bd1[...]
    d = jnp.maximum(d, 0.0).astype(mm)
    d = jnp.dot(d, wd2[...], preferred_element_type=jnp.float32) + bd2[...]
    d = jnp.maximum(d, 0.0).astype(mm)
    out = jnp.dot(d, wd3[...], preferred_element_type=jnp.float32) + bd3[...]

    # out == 0 on lanes >= lat_off; mv == 0 outside [lat_off, lat_off+2*latent).
    # Single lane-dense packed store.
    out_ref[...] = out + mv


def init_vae_params(key, in_channels, out_channels, num_joints, latent_dim=20):
    """Deterministic synthetic parameters. Weights stored as (in, out), f32."""
    in_dim = in_channels * num_joints
    out_dim = out_channels * num_joints
    dims = [
        ("w1", (in_dim, 64)), ("b1", (1, 64)),
        ("w2", (64, 128)), ("b2", (1, 128)),
        ("wmu", (128, latent_dim)), ("bmu", (1, latent_dim)),
        ("wvar", (128, latent_dim)), ("bvar", (1, latent_dim)),
        ("wd1", (latent_dim, 128)), ("bd1", (1, 128)),
        ("wd2", (128, 64)), ("bd2", (1, 64)),
        ("wd3", (64, out_dim)), ("bd3", (1, out_dim)),
    ]
    params = {}
    keys = jax.random.split(key, len(dims))
    for k, (name, shape) in zip(keys, dims):
        fan_in = shape[0] if shape[0] > 1 else shape[1]
        scale = 1.0 / jnp.sqrt(jnp.float32(fan_in))
        params[name] = scale * jax.random.normal(k, shape, dtype=jnp.float32)
    return params


def _pack_params(params, slab_w, lat_off, matmul_dtype):
    """Place fc_mu/fc_var/decoder columns at their final output lanes; cast."""
    latent_dim = params["wmu"].shape[1]

    def place_cols(w, start):
        return jnp.pad(w, ((0, 0), (start, slab_w - start - w.shape[1])))

    wmv = place_cols(params["wmu"], lat_off) + place_cols(params["wvar"],
                                                          lat_off + latent_dim)
    bmv = place_cols(params["bmu"], lat_off) + place_cols(params["bvar"],
                                                          lat_off + latent_dim)
    wrep = place_cols(params["wvar"], lat_off)      # log_var aligned to mu lanes
    brep = place_cols(params["bvar"], lat_off)
    wd1 = jnp.pad(params["wd1"],
                  ((lat_off, slab_w - lat_off - latent_dim), (0, 0)))
    wd3 = place_cols(params["wd3"], 0)
    bd3 = place_cols(params["bd3"], 0)

    f32 = jnp.float32
    return {
        "w1": params["w1"].astype(matmul_dtype), "b1": params["b1"].astype(f32),
        "w2": params["w2"].astype(matmul_dtype), "b2": params["b2"].astype(f32),
        "wmv": wmv.astype(matmul_dtype),         "bmv": bmv.astype(f32),
        "wrep": wrep.astype(matmul_dtype),       "brep": brep.astype(f32),
        "wd1": wd1.astype(matmul_dtype),         "bd1": params["bd1"].astype(f32),
        "wd2": params["wd2"].astype(matmul_dtype), "bd2": params["bd2"].astype(f32),
        "wd3": wd3.astype(matmul_dtype),         "bd3": bd3.astype(f32),
    }


def _pick_tiling():
    """Per-generation batch-tile cap and VMEM scoped limit."""
    try:
        vmem_phys = int(getattr(pltpu.get_tpu_info(), "vmem_capacity_bytes", 0))
    except Exception:
        vmem_phys = 0
    if vmem_phys >= (100 << 20):      # v5e / v6e: 128 MiB physical per core
        return 4096, 64 << 20
    if vmem_phys >= (48 << 20):       # v7x-class: 64 MiB per TensorCore
        return 2048, 40 << 20
    return 1024, None                 # unknown / small parts: safe defaults


def vae_forward(x, params, eps=None, *, out_channels, training=True, rng_seed=0,
                matmul_dtype=jnp.bfloat16, tile_n_max=None, vmem_limit_bytes=None):
    """x: (N, C, T=1, V) float32. Returns (out (N, out_ch, 1, V), mu, log_var).

    training=True, eps=None  -> eps generated in-kernel (TPU PRNG, no HBM eps).
    training=True, eps given -> explicit eps (N, latent_dim), parity path.
    training=False           -> z = mu.
    """
    N, C, T, V = x.shape
    assert T == 1
    in_dim = C * V
    latent_dim = params["wmu"].shape[1]
    out_dim = params["wd3"].shape[1]
    assert out_dim == out_channels * V

    lat_off = out_dim
    slab_w = _round_up(out_dim + 2 * latent_dim, 128)

    if tile_n_max is None:
        tile_n_max, auto_vmem = _pick_tiling()
        if vmem_limit_bytes is None:
            vmem_limit_bytes = auto_vmem

    # Batch tiling: >= 2 tiles whenever possible so the "parallel" batch axis
    # spans both TensorCores on megacore parts; near-minimal row padding.
    n8 = _round_up(N, 8)
    n_tiles = max(_cdiv(n8, tile_n_max), 2 if n8 >= 16 else 1)
    tile_n = _round_up(_cdiv(n8, n_tiles), 8)
    n_pad = n_tiles * tile_n

    # Input stays f32; cast to bf16 happens inside the kernel.
    x2d = jnp.pad(x.reshape(N, in_dim), ((0, n_pad - N), (0, 0)))

    use_rng = False
    if training and eps is None:
        if _HAS_KERNEL_RNG:
            use_rng = True
        else:
            # TODO(synk): no in-kernel stateful_normal on this jax version;
            # fall back to a host-generated eps stream.
            eps = jax.random.normal(jax.random.PRNGKey(rng_seed),
                                    (N, latent_dim), dtype=jnp.float32)

    packed = _pack_params(params, slab_w, lat_off, matmul_dtype)
    weight_order = ["w1", "b1", "w2", "b2", "wmv", "bmv", "wrep", "brep",
                    "wd1", "bd1", "wd2", "bd2", "wd3", "bd3"]
    weight_args = [packed[n] for n in weight_order]
    # Constant index_map -> weights are DMA'd once and stay VMEM-resident.
    weight_specs = [pl.BlockSpec(packed[n].shape, lambda i, s: (0, 0))
                    for n in weight_order]

    def batch_spec(feat):
        return pl.BlockSpec((tile_n, feat), lambda i, s: (i, 0))

    inputs = [x2d]
    in_specs = [batch_spec(in_dim)]
    if training and not use_rng:
        eps_packed = jnp.pad(
            eps.astype(jnp.float32),
            ((0, n_pad - N), (lat_off, slab_w - lat_off - latent_dim)))
        inputs.append(eps_packed)
        in_specs.append(batch_spec(slab_w))
    inputs += weight_args
    in_specs += weight_specs

    seed_arr = jnp.asarray([rng_seed], dtype=jnp.int32)

    cp_kwargs = dict(dimension_semantics=("parallel",))
    if vmem_limit_bytes is not None:
        cp_kwargs["vmem_limit_bytes"] = int(vmem_limit_bytes)

    slab = pl.pallas_call(
        functools.partial(_vae_kernel, training, use_rng, lat_off, latent_dim),
        grid_spec=pltpu.PrefetchScalarGridSpec(
            num_scalar_prefetch=1,
            grid=(n_tiles,),
            in_specs=in_specs,
            out_specs=batch_spec(slab_w),
        ),
        out_shape=jax.ShapeDtypeStruct((n_pad, slab_w), jnp.float32),
        compiler_params=pltpu.CompilerParams(**cp_kwargs),
    )(seed_arr, *inputs)

    # Single packed slab -> small slices (consumers that can accept the padded
    # slab directly should use it as-is and skip these).
    out = slab[:N, :out_dim].reshape(N, out_channels, T, V)
    mu = slab[:N, lat_off:lat_off + latent_dim]
    log_var = slab[:N, lat_off + latent_dim:lat_off + 2 * latent_dim]
    return out, mu, log_var


def vae_forward_ref(x, params, eps, *, out_channels, training=True):
    """Pure-JAX f32 reference matching the PyTorch module."""
    N, C, T, V = x.shape
    x2d = x.reshape(N, C * V)
    h = jax.nn.relu(x2d @ params["w1"] + params["b1"])
    h = jax.nn.relu(h @ params["w2"] + params["b2"])
    mu = h @ params["wmu"] + params["bmu"]
    log_var = h @ params["wvar"] + params["bvar"]
    z = mu + eps * jnp.exp(0.5 * log_var) if training else mu
    d = jax.nn.relu(z @ params["wd1"] + params["bd1"])
    d = jax.nn.relu(d @ params["wd2"] + params["bd2"])
    out = d @ params["wd3"] + params["bd3"]
    return out.reshape(N, out_channels, T, V), mu, log_var


if __name__ == "__main__":
    # Small shapes consistent with the module: pose with V=16 joints, 3 coords.
    N, C, T, V = 2, 3, 1, 16
    OUT_C = 3
    LATENT = 20

    key = jax.random.PRNGKey(0)
    kx, keps, kp = jax.random.split(key, 3)

    x = jax.random.normal(kx, (N, C, T, V), dtype=jnp.float32)
    eps = jax.random.normal(keps, (N, LATENT), dtype=jnp.float32)
    params = init_vae_params(kp, C, OUT_C, V, latent_dim=LATENT)

    # 1) Training path with explicit eps (parity with the reference).
    out, mu, log_var = vae_forward(x, params, eps, out_channels=OUT_C,
                                   training=True)
    jax.block_until_ready((out, mu, log_var))
    out_r, mu_r, lv_r = vae_forward_ref(x, params, eps, out_channels=OUT_C,
                                        training=True)
    assert out.shape == (N, OUT_C, T, V)
    assert mu.shape == (N, LATENT) and log_var.shape == (N, LATENT)
    # bf16 MXU inputs with f32 accumulation -> loosened tolerances.
    assert jnp.allclose(out, out_r, atol=5e-2, rtol=5e-2)
    assert jnp.allclose(mu, mu_r, atol=5e-2, rtol=5e-2)
    assert jnp.allclose(log_var, lv_r, atol=5e-2, rtol=5e-2)

    # 2) Eval path (z = mu, no eps input / DMA at all).
    out_e, mu_e, lv_e = vae_forward(x, params, out_channels=OUT_C,
                                    training=False)
    jax.block_until_ready((out_e, mu_e, lv_e))
    out_er, mu_er, lv_er = vae_forward_ref(x, params, eps, out_channels=OUT_C,
                                           training=False)
    assert jnp.allclose(out_e, out_er, atol=5e-2, rtol=5e-2)
    assert jnp.allclose(mu_e, mu_er, atol=5e-2, rtol=5e-2)
    assert jnp.allclose(lv_e, lv_er, atol=5e-2, rtol=5e-2)

    # 3) Training perf path: eps generated in-kernel (no eps HBM stream).
    #    mu / log_var do not depend on eps, so they still check against the ref.
    if _HAS_KERNEL_RNG:
        try:
            out_k, mu_k, lv_k = vae_forward(x, params, out_channels=OUT_C,
                                            training=True, rng_seed=42)
            jax.block_until_ready((out_k, mu_k, lv_k))
            assert out_k.shape == (N, OUT_C, T, V)
            assert bool(jnp.all(jnp.isfinite(out_k)))
            assert jnp.allclose(mu_k, mu_r, atol=5e-2, rtol=5e-2)
            assert jnp.allclose(lv_k, lv_r, atol=5e-2, rtol=5e-2)
        except Exception as e:  # safety net against pltpu RNG API drift
            print(f"note: in-kernel RNG path skipped "
                  f"({type(e).__name__}: {e})")

    print("KERNEL_OK")
</pallas_src>

<mosaic_0001>
module attributes {stable_mosaic.version = 11 : i64} {
  func.func @_vae_kernel(%arg0: i32, %arg1: memref<1xi32, #tpu.memory_space<smem>>, %arg2: memref<8x48xf32, #tpu.memory_space<vmem>>, %arg3: memref<8x128xf32, #tpu.memory_space<vmem>>, %arg4: memref<48x64xbf16, #tpu.memory_space<vmem>>, %arg5: memref<1x64xf32, #tpu.memory_space<vmem>>, %arg6: memref<64x128xbf16, #tpu.memory_space<vmem>>, %arg7: memref<1x128xf32, #tpu.memory_space<vmem>>, %arg8: memref<128x128xbf16, #tpu.memory_space<vmem>>, %arg9: memref<1x128xf32, #tpu.memory_space<vmem>>, %arg10: memref<128x128xbf16, #tpu.memory_space<vmem>>, %arg11: memref<1x128xf32, #tpu.memory_space<vmem>>, %arg12: memref<128x128xbf16, #tpu.memory_space<vmem>>, %arg13: memref<1x128xf32, #tpu.memory_space<vmem>>, %arg14: memref<128x64xbf16, #tpu.memory_space<vmem>>, %arg15: memref<1x64xf32, #tpu.memory_space<vmem>>, %arg16: memref<64x128xbf16, #tpu.memory_space<vmem>>, %arg17: memref<1x128xf32, #tpu.memory_space<vmem>>, %arg18: memref<8x128xf32, #tpu.memory_space<vmem>>) attributes {dimension_semantics = [#tpu.dimension_semantics<parallel>], iteration_bounds = array<i64: 1>, scalar_prefetch = 1 : i64, scratch_operands = 0 : i64, tpu.core_type = #tpu.core_type<tc>, window_params = [{transform_indices = @transform_0, window_bounds = array<i64: 8, 48>}, {transform_indices = @transform_1, window_bounds = array<i64: 8, 128>}, {pipeline_mode = #tpu.pipeline_mode<synchronous>, transform_indices = @transform_2, window_bounds = array<i64: 48, 64>}, {pipeline_mode = #tpu.pipeline_mode<synchronous>, transform_indices = @transform_3, window_bounds = array<i64: 1, 64>}, {pipeline_mode = #tpu.pipeline_mode<synchronous>, transform_indices = @transform_4, window_bounds = array<i64: 64, 128>}, {pipeline_mode = #tpu.pipeline_mode<synchronous>, transform_indices = @transform_5, window_bounds = array<i64: 1, 128>}, {pipeline_mode = #tpu.pipeline_mode<synchronous>, transform_indices = @transform_6, window_bounds = array<i64: 128, 128>}, {pipeline_mode = #tpu.pipeline_mode<synchronous>, transform_indices = @transform_7, window_bounds = array<i64: 1, 128>}, {pipeline_mode = #tpu.pipeline_mode<synchronous>, transform_indices = @transform_8, window_bounds = array<i64: 128, 128>}, {pipeline_mode = #tpu.pipeline_mode<synchronous>, transform_indices = @transform_9, window_bounds = array<i64: 1, 128>}, {pipeline_mode = #tpu.pipeline_mode<synchronous>, transform_indices = @transform_10, window_bounds = array<i64: 128, 128>}, {pipeline_mode = #tpu.pipeline_mode<synchronous>, transform_indices = @transform_11, window_bounds = array<i64: 1, 128>}, {pipeline_mode = #tpu.pipeline_mode<synchronous>, transform_indices = @transform_12, window_bounds = array<i64: 128, 64>}, {pipeline_mode = #tpu.pipeline_mode<synchronous>, transform_indices = @transform_13, window_bounds = array<i64: 1, 64>}, {pipeline_mode = #tpu.pipeline_mode<synchronous>, transform_indices = @transform_14, window_bounds = array<i64: 64, 128>}, {pipeline_mode = #tpu.pipeline_mode<synchronous>, transform_indices = @transform_15, window_bounds = array<i64: 1, 128>}, {transform_indices = @transform_16, window_bounds = array<i64: 8, 128>}]} {
    %c0 = arith.constant 0 : index
    %c0_0 = arith.constant 0 : index
    %0 = vector.load %arg2[%c0, %c0_0] : memref<8x48xf32, #tpu.memory_space<vmem>>, vector<8x48xf32>
    %1 = arith.truncf %0 : vector<8x48xf32> to vector<8x48xbf16>
    %c0_1 = arith.constant 0 : index
    %c0_2 = arith.constant 0 : index
    %2 = vector.load %arg4[%c0_1, %c0_2] : memref<48x64xbf16, #tpu.memory_space<vmem>>, vector<48x64xbf16>
    %cst = arith.constant dense<0.000000e+00> : vector<8x64xf32>
    %3 = tpu.matmul %1, %2, %cst {dimension_numbers = #tpu.dot_dimension_numbers<[1], [0], [0], [1], [0, 0, 1, 1], [], []>} : vector<8x48xbf16>, vector<48x64xbf16>, vector<8x64xf32> -> vector<8x64xf32>
    %c0_3 = arith.constant 0 : index
    %c0_4 = arith.constant 0 : index
    %4 = vector.load %arg5[%c0_3, %c0_4] : memref<1x64xf32, #tpu.memory_space<vmem>>, vector<1x64xf32>
    %5 = vector.broadcast %4 : vector<1x64xf32> to vector<8x64xf32>
    %6 = arith.addf %3, %5 : vector<8x64xf32>
    %cst_5 = arith.constant 0.000000e+00 : f32
    %7 = vector.broadcast %cst_5 : f32 to vector<8x64xf32>
    %8 = arith.maximumf %6, %7 : vector<8x64xf32>
    %9 = arith.truncf %8 : vector<8x64xf32> to vector<8x64xbf16>
    %c0_6 = arith.constant 0 : index
    %c0_7 = arith.constant 0 : index
    %10 = vector.load %arg6[%c0_6, %c0_7] : memref<64x128xbf16, #tpu.memory_space<vmem>>, vector<64x128xbf16>
    %cst_8 = arith.constant dense<0.000000e+00> : vector<8x128xf32>
    %11 = tpu.matmul %9, %10, %cst_8 {dimension_numbers = #tpu.dot_dimension_numbers<[1], [0], [0], [1], [0, 0, 1, 1], [], []>} : vector<8x64xbf16>, vector<64x128xbf16>, vector<8x128xf32> -> vector<8x128xf32>
    %c0_9 = arith.constant 0 : index
    %c0_10 = arith.constant 0 : index
    %12 = vector.load %arg7[%c0_9, %c0_10] : memref<1x128xf32, #tpu.memory_space<vmem>>, vector<1x128xf32>
    %13 = vector.broadcast %12 : vector<1x128xf32> to vector<8x128xf32>
    %14 = arith.addf %11, %13 : vector<8x128xf32>
    %cst_11 = arith.constant 0.000000e+00 : f32
    %15 = vector.broadcast %cst_11 : f32 to vector<8x128xf32>
    %16 = arith.maximumf %14, %15 : vector<8x128xf32>
    %17 = arith.truncf %16 : vector<8x128xf32> to vector<8x128xbf16>
    %c0_12 = arith.constant 0 : index
    %c0_13 = arith.constant 0 : index
    %18 = vector.load %arg8[%c0_12, %c0_13] : memref<128x128xbf16, #tpu.memory_space<vmem>>, vector<128x128xbf16>
    %cst_14 = arith.constant dense<0.000000e+00> : vector<8x128xf32>
    %19 = tpu.matmul %17, %18, %cst_14 {dimension_numbers = #tpu.dot_dimension_numbers<[1], [0], [0], [1], [0, 0, 1, 1], [], []>} : vector<8x128xbf16>, vector<128x128xbf16>, vector<8x128xf32> -> vector<8x128xf32>
    %c0_15 = arith.constant 0 : index
    %c0_16 = arith.constant 0 : index
    %20 = vector.load %arg9[%c0_15, %c0_16] : memref<1x128xf32, #tpu.memory_space<vmem>>, vector<1x128xf32>
    %21 = vector.broadcast %20 : vector<1x128xf32> to vector<8x128xf32>
    %22 = arith.addf %19, %21 : vector<8x128xf32>
    %c0_17 = arith.constant 0 : index
    %c0_18 = arith.constant 0 : index
    %23 = vector.load %arg10[%c0_17, %c0_18] : memref<128x128xbf16, #tpu.memory_space<vmem>>, vector<128x128xbf16>
    %cst_19 = arith.constant dense<0.000000e+00> : vector<8x128xf32>
    %24 = tpu.matmul %17, %23, %cst_19 {dimension_numbers = #tpu.dot_dimension_numbers<[1], [0], [0], [1], [0, 0, 1, 1], [], []>} : vector<8x128xbf16>, vector<128x128xbf16>, vector<8x128xf32> -> vector<8x128xf32>
    %c0_20 = arith.constant 0 : index
    %c0_21 = arith.constant 0 : index
    %25 = vector.load %arg11[%c0_20, %c0_21] : memref<1x128xf32, #tpu.memory_space<vmem>>, vector<1x128xf32>
    %26 = vector.broadcast %25 : vector<1x128xf32> to vector<8x128xf32>
    %27 = arith.addf %24, %26 : vector<8x128xf32>
    %c0_22 = arith.constant 0 : index
    %c0_23 = arith.constant 0 : index
    %28 = vector.load %arg3[%c0_22, %c0_23] : memref<8x128xf32, #tpu.memory_space<vmem>>, vector<8x128xf32>
    %cst_24 = arith.constant 5.000000e-01 : f32
    %29 = vector.broadcast %cst_24 : f32 to vector<8x128xf32>
    %30 = arith.mulf %29, %27 : vector<8x128xf32>
    %31 = math.exp %30 : vector<8x128xf32>
    %32 = arith.mulf %28, %31 : vector<8x128xf32>
    %33 = arith.addf %22, %32 : vector<8x128xf32>
    %34 = arith.truncf %33 : vector<8x128xf32> to vector<8x128xbf16>
    %c0_25 = arith.constant 0 : index
    %c0_26 = arith.constant 0 : index
    %35 = vector.load %arg12[%c0_25, %c0_26] : memref<128x128xbf16, #tpu.memory_space<vmem>>, vector<128x128xbf16>
    %cst_27 = arith.constant dense<0.000000e+00> : vector<8x128xf32>
    %36 = tpu.matmul %34, %35, %cst_27 {dimension_numbers = #tpu.dot_dimension_numbers<[1], [0], [0], [1], [0, 0, 1, 1], [], []>} : vector<8x128xbf16>, vector<128x128xbf16>, vector<8x128xf32> -> vector<8x128xf32>
    %c0_28 = arith.constant 0 : index
    %c0_29 = arith.constant 0 : index
    %37 = vector.load %arg13[%c0_28, %c0_29] : memref<1x128xf32, #tpu.memory_space<vmem>>, vector<1x128xf32>
    %38 = vector.broadcast %37 : vector<1x128xf32> to vector<8x128xf32>
    %39 = arith.addf %36, %38 : vector<8x128xf32>
    %cst_30 = arith.constant 0.000000e+00 : f32
    %40 = vector.broadcast %cst_30 : f32 to vector<8x128xf32>
    %41 = arith.maximumf %39, %40 : vector<8x128xf32>
    %42 = arith.truncf %41 : vector<8x128xf32> to vector<8x128xbf16>
    %c0_31 = arith.constant 0 : index
    %c0_32 = arith.constant 0 : index
    %43 = vector.load %arg14[%c0_31, %c0_32] : memref<128x64xbf16, #tpu.memory_space<vmem>>, vector<128x64xbf16>
    %cst_33 = arith.constant dense<0.000000e+00> : vector<8x64xf32>
    %44 = tpu.matmul %42, %43, %cst_33 {dimension_numbers = #tpu.dot_dimension_numbers<[1], [0], [0], [1], [0, 0, 1, 1], [], []>} : vector<8x128xbf16>, vector<128x64xbf16>, vector<8x64xf32> -> vector<8x64xf32>
    %c0_34 = arith.constant 0 : index
    %c0_35 = arith.constant 0 : index
    %45 = vector.load %arg15[%c0_34, %c0_35] : memref<1x64xf32, #tpu.memory_space<vmem>>, vector<1x64xf32>
    %46 = vector.broadcast %45 : vector<1x64xf32> to vector<8x64xf32>
    %47 = arith.addf %44, %46 : vector<8x64xf32>
    %cst_36 = arith.constant 0.000000e+00 : f32
    %48 = vector.broadcast %cst_36 : f32 to vector<8x64xf32>
    %49 = arith.maximumf %47, %48 : vector<8x64xf32>
    %50 = arith.truncf %49 : vector<8x64xf32> to vector<8x64xbf16>
    %c0_37 = arith.constant 0 : index
    %c0_38 = arith.constant 0 : index
    %51 = vector.load %arg16[%c0_37, %c0_38] : memref<64x128xbf16, #tpu.memory_space<vmem>>, vector<64x128xbf16>
    %cst_39 = arith.constant dense<0.000000e+00> : vector<8x128xf32>
    %52 = tpu.matmul %50, %51, %cst_39 {dimension_numbers = #tpu.dot_dimension_numbers<[1], [0], [0], [1], [0, 0, 1, 1], [], []>} : vector<8x64xbf16>, vector<64x128xbf16>, vector<8x128xf32> -> vector<8x128xf32>
    %c0_40 = arith.constant 0 : index
    %c0_41 = arith.constant 0 : index
    %53 = vector.load %arg17[%c0_40, %c0_41] : memref<1x128xf32, #tpu.memory_space<vmem>>, vector<1x128xf32>
    %54 = vector.broadcast %53 : vector<1x128xf32> to vector<8x128xf32>
    %55 = arith.addf %52, %54 : vector<8x128xf32>
    %56 = arith.addf %55, %22 : vector<8x128xf32>
    %c0_42 = arith.constant 0 : index
    %c0_43 = arith.constant 0 : index
    %57 = vector.load %arg18[%c0_42, %c0_43] : memref<8x128xf32, #tpu.memory_space<vmem>>, vector<8x128xf32>
    tpu.vector_store %arg18[%c0_42, %c0_43], %56 {strides = array<i32>} : memref<8x128xf32, #tpu.memory_space<vmem>>, vector<8x128xf32>,
    return
  }
  func.func @transform_0(%arg0: i32, %arg1: memref<1xi32, #tpu.memory_space<smem>>) -> (i32, i32) {
    %c0_i32 = arith.constant 0 : i32
    %c0_i32_0 = arith.constant 0 : i32
    return %arg0, %c0_i32 : i32, i32
  }
  func.func @transform_1(%arg0: i32, %arg1: memref<1xi32, #tpu.memory_space<smem>>) -> (i32, i32) {
    %c0_i32 = arith.constant 0 : i32
    %c0_i32_0 = arith.constant 0 : i32
    return %arg0, %c0_i32 : i32, i32
  }
  func.func @transform_2(%arg0: i32, %arg1: memref<1xi32, #tpu.memory_space<smem>>) -> (i32, i32) {
    %c0_i32 = arith.constant 0 : i32
    %c0_i32_0 = arith.constant 0 : i32
    %c0_i32_1 = arith.constant 0 : i32
    return %c0_i32, %c0_i32_0 : i32, i32
  }
  func.func @transform_3(%arg0: i32, %arg1: memref<1xi32, #tpu.memory_space<smem>>) -> (i32, i32) {
    %c0_i32 = arith.constant 0 : i32
    %c0_i32_0 = arith.constant 0 : i32
    %c0_i32_1 = arith.constant 0 : i32
    return %c0_i32, %c0_i32_0 : i32, i32
  }
  func.func @transform_4(%arg0: i32, %arg1: memref<1xi32, #tpu.memory_space<smem>>) -> (i32, i32) {
    %c0_i32 = arith.constant 0 : i32
    %c0_i32_0 = arith.constant 0 : i32
    %c0_i32_1 = arith.constant 0 : i32
    return %c0_i32, %c0_i32_0 : i32, i32
  }
  func.func @transform_5(%arg0: i32, %arg1: memref<1xi32, #tpu.memory_space<smem>>) -> (i32, i32) {
    %c0_i32 = arith.constant 0 : i32
    %c0_i32_0 = arith.constant 0 : i32
    %c0_i32_1 = arith.constant 0 : i32
    return %c0_i32, %c0_i32_0 : i32, i32
  }
  func.func @transform_6(%arg0: i32, %arg1: memref<1xi32, #tpu.memory_space<smem>>) -> (i32, i32) {
    %c0_i32 = arith.constant 0 : i32
    %c0_i32_0 = arith.constant 0 : i32
    %c0_i32_1 = arith.constant 0 : i32
    return %c0_i32, %c0_i32_0 : i32, i32
  }
  func.func @transform_7(%arg0: i32, %arg1: memref<1xi32, #tpu.memory_space<smem>>) -> (i32, i32) {
    %c0_i32 = arith.constant 0 : i32
    %c0_i32_0 = arith.constant 0 : i32
    %c0_i32_1 = arith.constant 0 : i32
    return %c0_i32, %c0_i32_0 : i32, i32
  }
  func.func @transform_8(%arg0: i32, %arg1: memref<1xi32, #tpu.memory_space<smem>>) -> (i32, i32) {
    %c0_i32 = arith.constant 0 : i32
    %c0_i32_0 = arith.constant 0 : i32
    %c0_i32_1 = arith.constant 0 : i32
    return %c0_i32, %c0_i32_0 : i32, i32
  }
  func.func @transform_9(%arg0: i32, %arg1: memref<1xi32, #tpu.memory_space<smem>>) -> (i32, i32) {
    %c0_i32 = arith.constant 0 : i32
    %c0_i32_0 = arith.constant 0 : i32
    %c0_i32_1 = arith.constant 0 : i32
    return %c0_i32, %c0_i32_0 : i32, i32
  }
  func.func @transform_10(%arg0: i32, %arg1: memref<1xi32, #tpu.memory_space<smem>>) -> (i32, i32) {
    %c0_i32 = arith.constant 0 : i32
    %c0_i32_0 = arith.constant 0 : i32
    %c0_i32_1 = arith.constant 0 : i32
    return %c0_i32, %c0_i32_0 : i32, i32
  }
  func.func @transform_11(%arg0: i32, %arg1: memref<1xi32, #tpu.memory_space<smem>>) -> (i32, i32) {
    %c0_i32 = arith.constant 0 : i32
    %c0_i32_0 = arith.constant 0 : i32
    %c0_i32_1 = arith.constant 0 : i32
    return %c0_i32, %c0_i32_0 : i32, i32
  }
  func.func @transform_12(%arg0: i32, %arg1: memref<1xi32, #tpu.memory_space<smem>>) -> (i32, i32) {
    %c0_i32 = arith.constant 0 : i32
    %c0_i32_0 = arith.constant 0 : i32
    %c0_i32_1 = arith.constant 0 : i32
    return %c0_i32, %c0_i32_0 : i32, i32
  }
  func.func @transform_13(%arg0: i32, %arg1: memref<1xi32, #tpu.memory_space<smem>>) -> (i32, i32) {
    %c0_i32 = arith.constant 0 : i32
    %c0_i32_0 = arith.constant 0 : i32
    %c0_i32_1 = arith.constant 0 : i32
    return %c0_i32, %c0_i32_0 : i32, i32
  }
  func.func @transform_14(%arg0: i32, %arg1: memref<1xi32, #tpu.memory_space<smem>>) -> (i32, i32) {
    %c0_i32 = arith.constant 0 : i32
    %c0_i32_0 = arith.constant 0 : i32
    %c0_i32_1 = arith.constant 0 : i32
    return %c0_i32, %c0_i32_0 : i32, i32
  }
  func.func @transform_15(%arg0: i32, %arg1: memref<1xi32, #tpu.memory_space<smem>>) -> (i32, i32) {
    %c0_i32 = arith.constant 0 : i32
    %c0_i32_0 = arith.constant 0 : i32
    %c0_i32_1 = arith.constant 0 : i32
    return %c0_i32, %c0_i32_0 : i32, i32
  }
  func.func @transform_16(%arg0: i32, %arg1: memref<1xi32, #tpu.memory_space<smem>>) -> (i32, i32) {
    %c0_i32 = arith.constant 0 : i32
    %c0_i32_0 = arith.constant 0 : i32
    return %arg0, %c0_i32 : i32, i32
  }
}

</mosaic_0001>

<llo_original>
// kernel: tpu_custom_call.1
$region0: #{tpu_custom_call.1}
  #allocation0 [shape = 'u32[]', space=smem, size = 0x4, offset = 0x4, fixed_abs, tag = 'smem constant byte address 0x4 - core index']
  #allocation1 [shape = 'u32[144,128]{1,0:T(1,128)}', space=vmem, size = 0x12000, scoped, tag = 'internal scratch']
  #allocation2 [shape = 's32[1]{0}', space=sflag, size = 0x4, scoped, tag = 'scoped memory for tpu_custom_call.1']
  #allocation3 [shape = 's32[1]{0:T(128)S(6)}', space=smem, size = 0x200, scoped, tag = 'prefetched SMEM operand 0']
  %s0 = inlined_call_operand.<no memory space> [shape: s32[1], index: 0, kind: input, shape index: {}]
  %s1 = inlined_call_operand.hbm [shape: f32[8,48], index: 1, kind: input, shape index: {}]
  %s2 = inlined_call_operand.hbm [shape: f32[8,128], index: 2, kind: input, shape index: {}]
  %s3 = inlined_call_operand.hbm [shape: bf16[48,64], index: 3, kind: input, shape index: {}]
  %s4 = inlined_call_operand.vmem [shape: f32[1,64], index: 4, kind: input, shape index: {}]
  %s5 = inlined_call_operand.hbm [shape: bf16[64,128], index: 5, kind: input, shape index: {}]
  %s6 = inlined_call_operand.vmem [shape: f32[1,128], index: 6, kind: input, shape index: {}]
  %s7 = inlined_call_operand.vmem [shape: bf16[128,128], index: 7, kind: input, shape index: {}]
  %s8 = inlined_call_operand.hbm [shape: f32[1,128], index: 8, kind: input, shape index: {}]
  %s9 = inlined_call_operand.vmem [shape: bf16[128,128], index: 9, kind: input, shape index: {}]
  %s10 = inlined_call_operand.vmem [shape: f32[1,128], index: 10, kind: input, shape index: {}]
  %s11 = inlined_call_operand.hbm [shape: bf16[128,128], index: 11, kind: input, shape index: {}]
  %s12 = inlined_call_operand.vmem [shape: f32[1,128], index: 12, kind: input, shape index: {}]
  %s13 = inlined_call_operand.vmem [shape: bf16[128,64], index: 13, kind: input, shape index: {}]
  %s14 = inlined_call_operand.vmem [shape: f32[1,64], index: 14, kind: input, shape index: {}]
  %s15 = inlined_call_operand.hbm [shape: bf16[64,128], index: 15, kind: input, shape index: {}]
  %s16 = inlined_call_operand.vmem [shape: f32[1,128], index: 16, kind: input, shape index: {}]
  %s17 = inlined_call_operand.hbm [shape: f32[8,128], index: 17, kind: output, shape index: {}]
  %s18 = sld [smem:[#allocation0]]
  $region102: #{tpu_custom_call.1} parent=0
    _
  %s20 = ssub.s32 1, %s18
  %s21 = scalar_select 0, %s20, %s18
  %22 = sst [smem:[#allocation3]] %s0
  $region1: #{tpu_custom_call.1} parent=0
    #allocation4 [shape = 'u8[4096]{0}', space=vmem, size = 0x1000, scoped, tag = 'input window, operand 1, single buffered']
    #allocation5 [shape = 's32[1]{0}', space=sflag, size = 0x4, scoped, tag = 'scoped memory for tpu_custom_call.1']
    #allocation6 [shape = 's32[1]{0}', space=sflag, size = 0x4, scoped, tag = 'scoped memory for tpu_custom_call.1']
    #allocation7 [shape = 'u8[4096]{0}', space=vmem, size = 0x1000, scoped, tag = 'input window, operand 2, single buffered']
    #allocation8 [shape = 's32[1]{0}', space=sflag, size = 0x4, scoped, tag = 'scoped memory for tpu_custom_call.1']
    #allocation9 [shape = 'u8[12288]{0}', space=vmem, size = 0x3000, scoped, tag = 'input window, operand 3, single buffered']
    #allocation10 [shape = 'u8[16384]{0}', space=vmem, size = 0x4000, scoped, tag = 'input window, operand 5, single buffered']
    #allocation11 [shape = 's32[1]{0}', space=sflag, size = 0x4, scoped, tag = 'scoped memory for tpu_custom_call.1']
    #allocation12 [shape = 'u8[512]{0}', space=vmem, size = 0x400, scoped, tag = 'input window, operand 8, single buffered']
    #allocation13 [shape = 'u8[32768]{0}', space=vmem, size = 0x8000, scoped, tag = 'input window, operand 11, single buffered']
    #allocation14 [shape = 's32[1]{0}', space=sflag, size = 0x4, scoped, tag = 'scoped memory for tpu_custom_call.1']
    #allocation15 [shape = 'u8[16384]{0}', space=vmem, size = 0x4000, scoped, tag = 'input window, operand 15, single buffered']
    #allocation16 [shape = 'u8[4096]{0}', space=vmem, size = 0x1000, scoped, tag = 'output window, operand 0, single buffered']
    %23 = vsyncpa [#allocation5], 0
    %24 = vsyncpa [#allocation8], 0
    %25 = vsyncpa [#allocation11], 0
    %26 = vsyncpa [#allocation14], 0
    %27 = vsyncpa [#allocation6], 0
    // Predicated region
    $region2: #{tpu_custom_call.1} parent=1 // pred_check
      _
    $region3: #{tpu_custom_call.1} parent=1 // pred_check_branch
      %29 = sbr.rel (0) target = $region5
    $region4: #{tpu_custom_call.1} parent=1 // pred_region
      %s31 = ssub.s32 128, 128
      %32 = vsyncadd [#allocation5], %s31
      %s34 = sshll.u32 [#allocation4], 4
      %s35 = int_to_ptr.vmem [resolvable:$true] %s34
      %37 = dma.hbm_to_vmem [thread:$0]  %s1, 128, %s35, [#allocation5]
    $region5: #{tpu_custom_call.1} parent=1 // pred_fallthru
      _
    // Predicated region
    $region6: #{tpu_custom_call.1} parent=1 // pred_check
      _
    $region7: #{tpu_custom_call.1} parent=1 // pred_check_branch
      %39 = sbr.rel (0) target = $region9
    $region8: #{tpu_custom_call.1} parent=1 // pred_region
      %s41 = ssub.s32 128, 128
      %42 = vsyncadd [#allocation8], %s41
      %s44 = sshll.u32 [#allocation7], 4
      %s45 = int_to_ptr.vmem [resolvable:$true] %s44
      %47 = dma.hbm_to_vmem [thread:$0]  %s2, 128, %s45, [#allocation8]
    $region9: #{tpu_custom_call.1} parent=1 // pred_fallthru
      _
    // Predicated region
    $region10: #{tpu_custom_call.1} parent=1 // pred_check
      _
    $region11: #{tpu_custom_call.1} parent=1 // pred_check_branch
      %49 = sbr.rel (0) target = $region13
    $region12: #{tpu_custom_call.1} parent=1 // pred_region
      %s51 = ssub.s32 384, 384
      %52 = vsyncadd [#allocation8], %s51
      %s53 = sshll.u32 [#allocation9], 4
      %s54 = int_to_ptr.vmem [resolvable:$true] %s53
      %59 = dma.hbm_to_vmem [thread:$0]  %s3, 384, %s54, [#allocation8], 64, 64, 4
    $region13: #{tpu_custom_call.1} parent=1 // pred_fallthru
      _
    // Predicated region
    $region14: #{tpu_custom_call.1} parent=1 // pred_check
      _
    $region15: #{tpu_custom_call.1} parent=1 // pred_check_branch
      %61 = sbr.rel (0) target = $region17
    $region16: #{tpu_custom_call.1} parent=1 // pred_region
      _
    $region17: #{tpu_custom_call.1} parent=1 // pred_fallthru
      _
    // Predicated region
    $region18: #{tpu_custom_call.1} parent=1 // pred_check
      _
    $region19: #{tpu_custom_call.1} parent=1 // pred_check_branch
      %63 = sbr.rel (0) target = $region21
    $region20: #{tpu_custom_call.1} parent=1 // pred_region
      %s65 = ssub.s32 512, 512
      %66 = vsyncadd [#allocation11], %s65
      %s67 = sshll.u32 [#allocation10], 4
      %s68 = int_to_ptr.vmem [resolvable:$true] %s67
      %73 = dma.hbm_to_vmem [thread:$0]  %s5, 512, %s68, [#allocation11], 64, 64, 4
    $region21: #{tpu_custom_call.1} parent=1 // pred_fallthru
      _
    // Predicated region
    $region22: #{tpu_custom_call.1} parent=1 // pred_check
      _
    $region23: #{tpu_custom_call.1} parent=1 // pred_check_branch
      %75 = sbr.rel (0) target = $region25
    $region24: #{tpu_custom_call.1} parent=1 // pred_region
      _
    $region25: #{tpu_custom_call.1} parent=1 // pred_fallthru
      _
    // Predicated region
    $region26: #{tpu_custom_call.1} parent=1 // pred_check
      _
    $region27: #{tpu_custom_call.1} parent=1 // pred_check_branch
      %77 = sbr.rel (0) target = $region29
    $region28: #{tpu_custom_call.1} parent=1 // pred_region
      _
    $region29: #{tpu_custom_call.1} parent=1 // pred_fallthru
      _
    // Predicated region
    $region30: #{tpu_custom_call.1} parent=1 // pred_check
      _
    $region31: #{tpu_custom_call.1} parent=1 // pred_check_branch
      %79 = sbr.rel (0) target = $region33
    $region32: #{tpu_custom_call.1} parent=1 // pred_region
      %s81 = ssub.s32 16, 16
      %82 = vsyncadd [#allocation11], %s81
      %s84 = sshll.u32 [#allocation12], 4
      %s85 = int_to_ptr.vmem [resolvable:$true] %s84
      %87 = dma.hbm_to_vmem [thread:$0]  %s8, 16, %s85, [#allocation11]
    $region33: #{tpu_custom_call.1} parent=1 // pred_fallthru
      _
    // Predicated region
    $region34: #{tpu_custom_call.1} parent=1 // pred_check
      _
    $region35: #{tpu_custom_call.1} parent=1 // pred_check_branch
      %89 = sbr.rel (0) target = $region37
    $region36: #{tpu_custom_call.1} parent=1 // pred_region
      _
    $region37: #{tpu_custom_call.1} parent=1 // pred_fallthru
      _
    // Predicated region
    $region38: #{tpu_custom_call.1} parent=1 // pred_check
      _
    $region39: #{tpu_custom_call.1} parent=1 // pred_check_branch
      %91 = sbr.rel (0) target = $region41
    $region40: #{tpu_custom_call.1} parent=1 // pred_region
      _
    $region41: #{tpu_custom_call.1} parent=1 // pred_fallthru
      _
    // Predicated region
    $region42: #{tpu_custom_call.1} parent=1 // pred_check
      _
    $region43: #{tpu_custom_call.1} parent=1 // pred_check_branch
      %93 = sbr.rel (0) target = $region45
    $region44: #{tpu_custom_call.1} parent=1 // pred_region
      %s95 = ssub.s32 1024, 1024
      %96 = vsyncadd [#allocation14], %s95
      %s97 = sshll.u32 [#allocation13], 4
      %s98 = int_to_ptr.vmem [resolvable:$true] %s97
      %103 = dma.hbm_to_vmem [thread:$0]  %s11, 1024, %s98, [#allocation14], 64, 64, 4
    $region45: #{tpu_custom_call.1} parent=1 // pred_fallthru
      _
    // Predicated region
    $region46: #{tpu_custom_call.1} parent=1 // pred_check
      _
    $region47: #{tpu_custom_call.1} parent=1 // pred_check_branch
      %105 = sbr.rel (0) target = $region49
    $region48: #{tpu_custom_call.1} parent=1 // pred_region
      _
    $region49: #{tpu_custom_call.1} parent=1 // pred_fallthru
      _
    // Predicated region
    $region50: #{tpu_custom_call.1} parent=1 // pred_check
      _
    $region51: #{tpu_custom_call.1} parent=1 // pred_check_branch
      %107 = sbr.rel (0) target = $region53
    $region52: #{tpu_custom_call.1} parent=1 // pred_region
      _
    $region53: #{tpu_custom_call.1} parent=1 // pred_fallthru
      _
    // Predicated region
    $region54: #{tpu_custom_call.1} parent=1 // pred_check
      _
    $region55: #{tpu_custom_call.1} parent=1 // pred_check_branch
      %109 = sbr.rel (0) target = $region57
    $region56: #{tpu_custom_call.1} parent=1 // pred_region
      _
    $region57: #{tpu_custom_call.1} parent=1 // pred_fallthru
      _
    // Predicated region
    $region58: #{tpu_custom_call.1} parent=1 // pred_check
      _
    $region59: #{tpu_custom_call.1} parent=1 // pred_check_branch
      %111 = sbr.rel (0) target = $region61
    $region60: #{tpu_custom_call.1} parent=1 // pred_region
      %s113 = ssub.s32 512, 512
      %114 = vsyncadd [#allocation14], %s113
      %s115 = sshll.u32 [#allocation15], 4
      %s116 = int_to_ptr.vmem [resolvable:$true] %s115
      %121 = dma.hbm_to_vmem [thread:$0]  %s15, 512, %s116, [#allocation14], 64, 64, 4
    $region61: #{tpu_custom_call.1} parent=1 // pred_fallthru
      _
    // Predicated region
    $region62: #{tpu_custom_call.1} parent=1 // pred_check
      _
    $region63: #{tpu_custom_call.1} parent=1 // pred_check_branch
      %123 = sbr.rel (0) target = $region65
    $region64: #{tpu_custom_call.1} parent=1 // pred_region
      _
    $region65: #{tpu_custom_call.1} parent=1 // pred_fallthru
      _
    // Predicated region
    $region66: #{tpu_custom_call.1} parent=1 // pred_check
      _
    $region67: #{tpu_custom_call.1} parent=1 // pred_check_branch
      %125 = sbr.rel (0) target = $region69
    $region68: #{tpu_custom_call.1} parent=1 // pred_region
      %126 = dma.done [#allocation5], 128
    $region69: #{tpu_custom_call.1} parent=1 // pred_fallthru
      _
    // Predicated region
    $region70: #{tpu_custom_call.1} parent=1 // pred_check
      _
    $region71: #{tpu_custom_call.1} parent=1 // pred_check_branch
      %128 = sbr.rel (0) target = $region73
    $region72: #{tpu_custom_call.1} parent=1 // pred_region
      %129 = dma.done [#allocation8], 128
    $region73: #{tpu_custom_call.1} parent=1 // pred_fallthru
      _
    // Predicated region
    $region74: #{tpu_custom_call.1} parent=1 // pred_check
      _
    $region75: #{tpu_custom_call.1} parent=1 // pred_check_branch
      %131 = sbr.rel (0) target = $region77
    $region76: #{tpu_custom_call.1} parent=1 // pred_region
      %132 = dma.done [#allocation8], 384
    $region77: #{tpu_custom_call.1} parent=1 // pred_fallthru
      _
    // Predicated region
    $region78: #{tpu_custom_call.1} parent=1 // pred_check
      _
    $region79: #{tpu_custom_call.1} parent=1 // pred_check_branch
      %134 = sbr.rel (0) target = $region81
    $region80: #{tpu_custom_call.1} parent=1 // pred_region
      %135 = dma.done [#allocation11], 512
    $region81: #{tpu_custom_call.1} parent=1 // pred_fallthru
      _
    // Predicated region
    $region82: #{tpu_custom_call.1} parent=1 // pred_check
      _
    $region83: #{tpu_custom_call.1} parent=1 // pred_check_branch
      %137 = sbr.rel (0) target = $region85
    $region84: #{tpu_custom_call.1} parent=1 // pred_region
      %138 = dma.done [#allocation11], 16
    $region85: #{tpu_custom_call.1} parent=1 // pred_fallthru
      _
    // Predicated region
    $region86: #{tpu_custom_call.1} parent=1 // pred_check
      _
    $region87: #{tpu_custom_call.1} parent=1 // pred_check_branch
      %140 = sbr.rel (0) target = $region89
    $region88: #{tpu_custom_call.1} parent=1 // pred_region
      %141 = dma.done [#allocation14], 1024
    $region89: #{tpu_custom_call.1} parent=1 // pred_fallthru
      _
    // Predicated region
    $region90: #{tpu_custom_call.1} parent=1 // pred_check
      _
    $region91: #{tpu_custom_call.1} parent=1 // pred_check_branch
      %143 = sbr.rel (0) target = $region93
    $region92: #{tpu_custom_call.1} parent=1 // pred_region
      %144 = dma.done [#allocation14], 512
    $region93: #{tpu_custom_call.1} parent=1 // pred_fallthru
      _
    %v146 = vld [vmem:[#allocation4] sm:$0xff]
    %v147 = vpack.c.bf16 %v146, %v146
    %v148 = vld [vmem:[#allocation9] sm:$0xf]
    %v149 = vld [vmem:[#allocation9 + $0x4] sm:$0xf]
    %v150 = vld [vmem:[#allocation9 + $0x8] sm:$0xf]
    %v151 = vld [vmem:[#allocation9 + $0xc] sm:$0xf]
    %v152 = vld [vmem:[#allocation9 + $0x10] sm:$0xf]
    %v153 = vld [vmem:[#allocation9 + $0x14] sm:$0xf]
    %v154 = vld [vmem:[%s4] sm:$0x1]
    %v156 = vlaneseq
    %v157 = vshrl.u32 %v156, 7
    %v158 = vsub.s32 0, %v157
    %v159 = vrot.slane %v154, %v158
    %v167 = vunpack.c.l.b16 %v148
    %v168 = vunpack.c.l.b16 %v149
    %v169 = vunpack.c.l.b16 %v150
    %v170 = vunpack.c.l.b16 %v151
    %v171 = vunpack.c.l.b16 %v152
    %v172 = vunpack.c.l.b16 %v153
    %v173 = vpack.c.b16 %v168, %v167
    %v174 = vpack.c.b16 %v170, %v169
    %v175 = vpack.c.b16 %v172, %v171
    %vm179 = vcmask 392192
    %v181 = vsel %vm179, %v147, 0
    %183 = vmatprep.subr.bf16.mxu0 0
    %184 = vmatpush1.bf16.msra.mxu0 %v173
    %185 = vmatprep.subr.bf16.mxu0 0
    %186 = vmatpush1.bf16.msra.mxu0 %v174
    %187 = vmatprep.subr.bf16.mxu0 0
    %188 = vmatpush1.bf16.msra.mxu0 %v175
    %189 = vmatprep.subr.bf16.mxu0 0
    %190 = vmatpush1.bf16.msra.mxu0 0
    %191 = vmatprep.subr.bf16.mxu0 0
    %192 = vmatpush1.bf16.msra.mxu0 0
    %193 = vmatprep.subr.bf16.mxu0 0
    %194 = vmatpush1.bf16.msra.mxu0 0
    %195 = vmatprep.subr.bf16.mxu0 0
    %196 = vmatpush1.bf16.msra.mxu0 0
    %197 = vmatprep.subr.bf16.mxu0 0
    %198 = vmatpush1.bf16.msra.mxu0 0
    %199 = vmatprep.subr.bf16.mxu0 0
    %200 = vmatpush1.bf16.msra.mxu0 0
    %201 = vmatprep.subr.bf16.mxu0 0
    %202 = vmatpush1.bf16.msra.mxu0 0
    %203 = vmatprep.subr.bf16.mxu0 0
    %204 = vmatpush1.bf16.msra.mxu0 0
    %205 = vmatprep.subr.bf16.mxu0 0
    %206 = vmatpush1.bf16.msra.mxu0 0
    %207 = vmatprep.subr.bf16.mxu0 0
    %208 = vmatpush1.bf16.msra.mxu0 0
    %209 = vmatprep.subr.bf16.mxu0 0
    %210 = vmatpush1.bf16.msra.mxu0 0
    %211 = vmatprep.subr.bf16.mxu0 0
    %212 = vmatpush1.bf16.msra.mxu0 0
    %213 = vmatprep.subr.bf16.mxu0 0
    %214 = vmatpush1.bf16.msra.mxu0 0
    %215 = vmatprep.mubr.bf16.mxu0 0
    %216 = vmatmul.mubr.bf16.gmra.mrb[0].mxu0 %v181
    %v217 = vpop.f32.mrb[0].mxu0
    %v218 = vadd.f32 %v159, %v217
    %v219 = vpop.f32.mrb[0].mxu0
    %v220 = vpop.f32.mrb[0].mxu0
    %v221 = vpop.f32.mrb[0].mxu0
    %222 = vdwg.mxu0
    %v223 = vmax.f32 %v218, 0.0
    %v224 = vpack.c.bf16 %v223, %v223
    %v225 = vld [vmem:[#allocation10] sm:$0xf]
    %v226 = vld [vmem:[#allocation10 + $0x4] sm:$0xf]
    %v227 = vld [vmem:[#allocation10 + $0x8] sm:$0xf]
    %v228 = vld [vmem:[#allocation10 + $0xc] sm:$0xf]
    %v229 = vld [vmem:[#allocation10 + $0x10] sm:$0xf]
    %v230 = vld [vmem:[#allocation10 + $0x14] sm:$0xf]
    %v231 = vld [vmem:[#allocation10 + $0x18] sm:$0xf]
    %v232 = vld [vmem:[#allocation10 + $0x1c] sm:$0xf]
    %v233 = vld [vmem:[%s6] sm:$0x1]
    %v235 = vlaneseq
    %v236 = vshrl.u32 %v235, 7
    %v237 = vsub.s32 0, %v236
    %v238 = vrot.slane %v233, %v237
    %v248 = vunpack.c.l.b16 %v225
    %v249 = vunpack.c.l.b16 %v226
    %v250 = vunpack.c.l.b16 %v227
    %v251 = vunpack.c.l.b16 %v228
    %v252 = vunpack.c.l.b16 %v229
    %v253 = vunpack.c.l.b16 %v230
    %v254 = vunpack.c.l.b16 %v231
    %v255 = vunpack.c.l.b16 %v232
    %v256 = vpack.c.b16 %v249, %v248
    %v257 = vpack.c.b16 %v251, %v250
    %v258 = vpack.c.b16 %v253, %v252
    %v259 = vpack.c.b16 %v255, %v254
    %vm264 = vcmask 523264
    %v266 = vsel %vm264, %v224, 0
    %268 = vmatprep.subr.bf16.mxu0 0
    %269 = vmatpush1.bf16.msra.mxu0 %v256
    %270 = vmatprep.subr.bf16.mxu0 0
    %271 = vmatpush1.bf16.msra.mxu0 %v257
    %272 = vmatprep.subr.bf16.mxu0 0
    %273 = vmatpush1.bf16.msra.mxu0 %v258
    %274 = vmatprep.subr.bf16.mxu0 0
    %275 = vmatpush1.bf16.msra.mxu0 %v259
    %276 = vmatprep.subr.bf16.mxu0 0
    %277 = vmatpush1.bf16.msra.mxu0 0
    %278 = vmatprep.subr.bf16.mxu0 0
    %279 = vmatpush1.bf16.msra.mxu0 0
    %280 = vmatprep.subr.bf16.mxu0 0
    %281 = vmatpush1.bf16.msra.mxu0 0
    %282 = vmatprep.subr.bf16.mxu0 0
    %283 = vmatpush1.bf16.msra.mxu0 0
    %284 = vmatprep.subr.bf16.mxu0 0
    %285 = vmatpush1.bf16.msra.mxu0 0
    %286 = vmatprep.subr.bf16.mxu0 0
    %287 = vmatpush1.bf16.msra.mxu0 0
    %288 = vmatprep.subr.bf16.mxu0 0
    %289 = vmatpush1.bf16.msra.mxu0 0
    %290 = vmatprep.subr.bf16.mxu0 0
    %291 = vmatpush1.bf16.msra.mxu0 0
    %292 = vmatprep.subr.bf16.mxu0 0
    %293 = vmatpush1.bf16.msra.mxu0 0
    %294 = vmatprep.subr.bf16.mxu0 0
    %295 = vmatpush1.bf16.msra.mxu0 0
    %296 = vmatprep.subr.bf16.mxu0 0
    %297 = vmatpush1.bf16.msra.mxu0 0
    %298 = vmatprep.subr.bf16.mxu0 0
    %299 = vmatpush1.bf16.msra.mxu0 0
    %300 = vmatprep.mubr.bf16.mxu0 0
    %301 = vmatmul.mubr.bf16.gmra.mrb[0].mxu0 %v266
    %v302 = vpop.f32.mrb[0].mxu0
    %v303 = vadd.f32 %v238, %v302
    %v304 = vpop.f32.mrb[0].mxu0
    %v305 = vpop.f32.mrb[0].mxu0
    %v306 = vpop.f32.mrb[0].mxu0
    %307 = vdwg.mxu0
    %v308 = vmax.f32 %v303, 0.0
    %v309 = vpack.c.bf16 %v308, %v308
    %v310 = vld [vmem:[%s7] sm:$0xf]
    %v311 = vld [vmem:[%s7 + $0x4] sm:$0xf]
    %v312 = vld [vmem:[%s7 + $0x8] sm:$0xf]
    %v313 = vld [vmem:[%s7 + $0xc] sm:$0xf]
    %v314 = vld [vmem:[%s7 + $0x10] sm:$0xf]
    %v315 = vld [vmem:[%s7 + $0x14] sm:$0xf]
    %v316 = vld [vmem:[%s7 + $0x18] sm:$0xf]
    %v317 = vld [vmem:[%s7 + $0x1c] sm:$0xf]
    %v318 = vld [vmem:[%s7 + $0x20] sm:$0xf]
    %v319 = vld [vmem:[%s7 + $0x24] sm:$0xf]
    %v320 = vld [vmem:[%s7 + $0x28] sm:$0xf]
    %v321 = vld [vmem:[%s7 + $0x2c] sm:$0xf]
    %v322 = vld [vmem:[%s7 + $0x30] sm:$0xf]
    %v323 = vld [vmem:[%s7 + $0x34] sm:$0xf]
    %v324 = vld [vmem:[%s7 + $0x38] sm:$0xf]
    %v325 = vld [vmem:[%s7 + $0x3c] sm:$0xf]
    %v326 = vld [vmem:[#allocation12] sm:$0x1]
    %v328 = vlaneseq
    %v329 = vshrl.u32 %v328, 7
    %v330 = vsub.s32 0, %v329
    %v331 = vrot.slane %v326, %v330
    %v349 = vunpack.c.l.b16 %v310
    %v350 = vunpack.c.l.b16 %v311
    %v351 = vunpack.c.l.b16 %v312
    %v352 = vunpack.c.l.b16 %v313
    %v353 = vunpack.c.l.b16 %v314
    %v354 = vunpack.c.l.b16 %v315
    %v355 = vunpack.c.l.b16 %v316
    %v356 = vunpack.c.l.b16 %v317
    %v357 = vunpack.c.l.b16 %v318
    %v358 = vunpack.c.l.b16 %v319
    %v359 = vunpack.c.l.b16 %v320
    %v360 = vunpack.c.l.b16 %v321
    %v361 = vunpack.c.l.b16 %v322
    %v362 = vunpack.c.l.b16 %v323
    %v363 = vunpack.c.l.b16 %v324
    %v364 = vunpack.c.l.b16 %v325
    %v365 = vpack.c.b16 %v350, %v349
    %v366 = vpack.c.b16 %v352, %v351
    %v367 = vpack.c.b16 %v354, %v353
    %v368 = vpack.c.b16 %v356, %v355
    %v369 = vpack.c.b16 %v358, %v357
    %v370 = vpack.c.b16 %v360, %v359
    %v371 = vpack.c.b16 %v362, %v361
    %v372 = vpack.c.b16 %v364, %v363
    %381 = vmatprep.subr.bf16.mxu0 0
    %382 = vmatpush1.bf16.msra.mxu0 %v365
    %383 = vmatprep.subr.bf16.mxu0 0
    %384 = vmatpush1.bf16.msra.mxu0 %v366
    %385 = vmatprep.subr.bf16.mxu0 0
    %386 = vmatpush1.bf16.msra.mxu0 %v367
    %387 = vmatprep.subr.bf16.mxu0 0
    %388 = vmatpush1.bf16.msra.mxu0 %v368
    %389 = vmatprep.subr.bf16.mxu0 0
    %390 = vmatpush1.bf16.msra.mxu0 %v369
    %391 = vmatprep.subr.bf16.mxu0 0
    %392 = vmatpush1.bf16.msra.mxu0 %v370
    %393 = vmatprep.subr.bf16.mxu0 0
    %394 = vmatpush1.bf16.msra.mxu0 %v371
    %395 = vmatprep.subr.bf16.mxu0 0
    %396 = vmatpush1.bf16.msra.mxu0 %v372
    %397 = vmatprep.subr.bf16.mxu0 0
    %398 = vmatpush1.bf16.msra.mxu0 0
    %399 = vmatprep.subr.bf16.mxu0 0
    %400 = vmatpush1.bf16.msra.mxu0 0
    %401 = vmatprep.subr.bf16.mxu0 0
    %402 = vmatpush1.bf16.msra.mxu0 0
    %403 = vmatprep.subr.bf16.mxu0 0
    %404 = vmatpush1.bf16.msra.mxu0 0
    %405 = vmatprep.subr.bf16.mxu0 0
    %406 = vmatpush1.bf16.msra.mxu0 0
    %407 = vmatprep.subr.bf16.mxu0 0
    %408 = vmatpush1.bf16.msra.mxu0 0
    %409 = vmatprep.subr.bf16.mxu0 0
    %410 = vmatpush1.bf16.msra.mxu0 0
    %411 = vmatprep.subr.bf16.mxu0 0
    %412 = vmatpush1.bf16.msra.mxu0 0
    %413 = vmatprep.mubr.bf16.mxu0 0
    %414 = vmatmul.mubr.bf16.gmra.mrb[0].mxu0 %v309
    %v415 = vpop.f32.mrb[0].mxu0
    %v416 = vadd.f32 %v331, %v415
    %v417 = vpop.f32.mrb[0].mxu0
    %v418 = vpop.f32.mrb[0].mxu0
    %v419 = vpop.f32.mrb[0].mxu0
    %420 = vdwg.mxu0
    %v421 = vld [vmem:[%s9] sm:$0xf]
    %v422 = vld [vmem:[%s9 + $0x4] sm:$0xf]
    %v423 = vld [vmem:[%s9 + $0x8] sm:$0xf]
    %v424 = vld [vmem:[%s9 + $0xc] sm:$0xf]
    %v425 = vld [vmem:[%s9 + $0x10] sm:$0xf]
    %v426 = vld [vmem:[%s9 + $0x14] sm:$0xf]
    %v427 = vld [vmem:[%s9 + $0x18] sm:$0xf]
    %v428 = vld [vmem:[%s9 + $0x1c] sm:$0xf]
    %v429 = vld [vmem:[%s9 + $0x20] sm:$0xf]
    %v430 = vld [vmem:[%s9 + $0x24] sm:$0xf]
    %v431 = vld [vmem:[%s9 + $0x28] sm:$0xf]
    %v432 = vld [vmem:[%s9 + $0x2c] sm:$0xf]
    %v433 = vld [vmem:[%s9 + $0x30] sm:$0xf]
    %v434 = vld [vmem:[%s9 + $0x34] sm:$0xf]
    %v435 = vld [vmem:[%s9 + $0x38] sm:$0xf]
    %v436 = vld [vmem:[%s9 + $0x3c] sm:$0xf]
    %v437 = vld [vmem:[%s10] sm:$0x1]
    %v439 = vlaneseq
    %v440 = vshrl.u32 %v439, 7
    %v441 = vsub.s32 0, %v440
    %v442 = vrot.slane %v437, %v441
    %v460 = vunpack.c.l.b16 %v421
    %v461 = vunpack.c.l.b16 %v422
    %v462 = vunpack.c.l.b16 %v423
    %v463 = vunpack.c.l.b16 %v424
    %v464 = vunpack.c.l.b16 %v425
    %v465 = vunpack.c.l.b16 %v426
    %v466 = vunpack.c.l.b16 %v427
    %v467 = vunpack.c.l.b16 %v428
    %v468 = vunpack.c.l.b16 %v429
    %v469 = vunpack.c.l.b16 %v430
    %v470 = vunpack.c.l.b16 %v431
    %v471 = vunpack.c.l.b16 %v432
    %v472 = vunpack.c.l.b16 %v433
    %v473 = vunpack.c.l.b16 %v434
    %v474 = vunpack.c.l.b16 %v435
    %v475 = vunpack.c.l.b16 %v436
    %v476 = vpack.c.b16 %v461, %v460
    %v477 = vpack.c.b16 %v463, %v462
    %v478 = vpack.c.b16 %v465, %v464
    %v479 = vpack.c.b16 %v467, %v466
    %v480 = vpack.c.b16 %v469, %v468
    %v481 = vpack.c.b16 %v471, %v470
    %v482 = vpack.c.b16 %v473, %v472
    %v483 = vpack.c.b16 %v475, %v474
    %492 = vmatprep.subr.bf16.mxu0 0
    %493 = vmatpush1.bf16.msra.mxu0 %v476
    %494 = vmatprep.subr.bf16.mxu0 0
    %495 = vmatpush1.bf16.msra.mxu0 %v477
    %496 = vmatprep.subr.bf16.mxu0 0
    %497 = vmatpush1.bf16.msra.mxu0 %v478
    %498 = vmatprep.subr.bf16.mxu0 0
    %499 = vmatpush1.bf16.msra.mxu0 %v479
    %500 = vmatprep.subr.bf16.mxu0 0
    %501 = vmatpush1.bf16.msra.mxu0 %v480
    %502 = vmatprep.subr.bf16.mxu0 0
    %503 = vmatpush1.bf16.msra.mxu0 %v481
    %504 = vmatprep.subr.bf16.mxu0 0
    %505 = vmatpush1.bf16.msra.mxu0 %v482
    %506 = vmatprep.subr.bf16.mxu0 0
    %507 = vmatpush1.bf16.msra.mxu0 %v483
    %508 = vmatprep.subr.bf16.mxu0 0
    %509 = vmatpush1.bf16.msra.mxu0 0
    %510 = vmatprep.subr.bf16.mxu0 0
    %511 = vmatpush1.bf16.msra.mxu0 0
    %512 = vmatprep.subr.bf16.mxu0 0
    %513 = vmatpush1.bf16.msra.mxu0 0
    %514 = vmatprep.subr.bf16.mxu0 0
    %515 = vmatpush1.bf16.msra.mxu0 0
    %516 = vmatprep.subr.bf16.mxu0 0
    %517 = vmatpush1.bf16.msra.mxu0 0
    %518 = vmatprep.subr.bf16.mxu0 0
    %519 = vmatpush1.bf16.msra.mxu0 0
    %520 = vmatprep.subr.bf16.mxu0 0
    %521 = vmatpush1.bf16.msra.mxu0 0
    %522 = vmatprep.subr.bf16.mxu0 0
    %523 = vmatpush1.bf16.msra.mxu0 0
    %524 = vmatprep.mubr.bf16.mxu0 0
    %525 = vmatmul.mubr.bf16.gmra.mrb[0].mxu0 %v309
    %v526 = vpop.f32.mrb[0].mxu0
    %v527 = vadd.f32 %v442, %v526
    %v528 = vpop.f32.mrb[0].mxu0
    %v529 = vpop.f32.mrb[0].mxu0
    %v530 = vpop.f32.mrb[0].mxu0
    %531 = vdwg.mxu0
    %v532 = vld [vmem:[#allocation7] sm:$0xff]
    %v533 = vmul.f32 %v527, 0.5
    %v534 = vmul.f32 %v533, 1.442695
    %v535 = vpow.pop %v534
    %v536 = vmul.f32 %v532, %v535
    %v537 = vadd.f32 %v416, %v536
    %v538 = vpack.c.bf16 %v537, %v537
    %v539 = vld [vmem:[#allocation13] sm:$0xf]
    %v540 = vld [vmem:[#allocation13 + $0x4] sm:$0xf]
    %v541 = vld [vmem:[#allocation13 + $0x8] sm:$0xf]
    %v542 = vld [vmem:[#allocation13 + $0xc] sm:$0xf]
    %v543 = vld [vmem:[#allocation13 + $0x10] sm:$0xf]
    %v544 = vld [vmem:[#allocation13 + $0x14] sm:$0xf]
    %v545 = vld [vmem:[#allocation13 + $0x18] sm:$0xf]
    %v546 = vld [vmem:[#allocation13 + $0x1c] sm:$0xf]
    %v547 = vld [vmem:[#allocation13 + $0x20] sm:$0xf]
    %v548 = vld [vmem:[#allocation13 + $0x24] sm:$0xf]
    %v549 = vld [vmem:[#allocation13 + $0x28] sm:$0xf]
    %v550 = vld [vmem:[#allocation13 + $0x2c] sm:$0xf]
    %v551 = vld [vmem:[#allocation13 + $0x30] sm:$0xf]
    %v552 = vld [vmem:[#allocation13 + $0x34] sm:$0xf]
    %v553 = vld [vmem:[#allocation13 + $0x38] sm:$0xf]
    %v554 = vld [vmem:[#allocation13 + $0x3c] sm:$0xf]
    %v555 = vld [vmem:[%s12] sm:$0x1]
    %v557 = vlaneseq
    %v558 = vshrl.u32 %v557, 7
    %v559 = vsub.s32 0, %v558
    %v560 = vrot.slane %v555, %v559
    %v578 = vunpack.c.l.b16 %v539
    %v579 = vunpack.c.l.b16 %v540
    %v580 = vunpack.c.l.b16 %v541
    %v581 = vunpack.c.l.b16 %v542
    %v582 = vunpack.c.l.b16 %v543
    %v583 = vunpack.c.l.b16 %v544
    %v584 = vunpack.c.l.b16 %v545
    %v585 = vunpack.c.l.b16 %v546
    %v586 = vunpack.c.l.b16 %v547
    %v587 = vunpack.c.l.b16 %v548
    %v588 = vunpack.c.l.b16 %v549
    %v589 = vunpack.c.l.b16 %v550
    %v590 = vunpack.c.l.b16 %v551
    %v591 = vunpack.c.l.b16 %v552
    %v592 = vunpack.c.l.b16 %v553
    %v593 = vunpack.c.l.b16 %v554
    %v594 = vpack.c.b16 %v579, %v578
    %v595 = vpack.c.b16 %v581, %v580
    %v596 = vpack.c.b16 %v583, %v582
    %v597 = vpack.c.b16 %v585, %v584
    %v598 = vpack.c.b16 %v587, %v586
    %v599 = vpack.c.b16 %v589, %v588
    %v600 = vpack.c.b16 %v591, %v590
    %v601 = vpack.c.b16 %v593, %v592
    %610 = vmatprep.subr.bf16.mxu0 0
    %611 = vmatpush1.bf16.msra.mxu0 %v594
    %612 = vmatprep.subr.bf16.mxu0 0
    %613 = vmatpush1.bf16.msra.mxu0 %v595
    %614 = vmatprep.subr.bf16.mxu0 0
    %615 = vmatpush1.bf16.msra.mxu0 %v596
    %616 = vmatprep.subr.bf16.mxu0 0
    %617 = vmatpush1.bf16.msra.mxu0 %v597
    %618 = vmatprep.subr.bf16.mxu0 0
    %619 = vmatpush1.bf16.msra.mxu0 %v598
    %620 = vmatprep.subr.bf16.mxu0 0
    %621 = vmatpush1.bf16.msra.mxu0 %v599
    %622 = vmatprep.subr.bf16.mxu0 0
    %623 = vmatpush1.bf16.msra.mxu0 %v600
    %624 = vmatprep.subr.bf16.mxu0 0
    %625 = vmatpush1.bf16.msra.mxu0 %v601
    %626 = vmatprep.subr.bf16.mxu0 0
    %627 = vmatpush1.bf16.msra.mxu0 0
    %628 = vmatprep.subr.bf16.mxu0 0
    %629 = vmatpush1.bf16.msra.mxu0 0
    %630 = vmatprep.subr.bf16.mxu0 0
    %631 = vmatpush1.bf16.msra.mxu0 0
    %632 = vmatprep.subr.bf16.mxu0 0
    %633 = vmatpush1.bf16.msra.mxu0 0
    %634 = vmatprep.subr.bf16.mxu0 0
    %635 = vmatpush1.bf16.msra.mxu0 0
    %636 = vmatprep.subr.bf16.mxu0 0
    %637 = vmatpush1.bf16.msra.mxu0 0
    %638 = vmatprep.subr.bf16.mxu0 0
    %639 = vmatpush1.bf16.msra.mxu0 0
    %640 = vmatprep.subr.bf16.mxu0 0
    %641 = vmatpush1.bf16.msra.mxu0 0
    %642 = vmatprep.mubr.bf16.mxu0 0
    %643 = vmatmul.mubr.bf16.gmra.mrb[0].mxu0 %v538
    %v644 = vpop.f32.mrb[0].mxu0
    %v645 = vadd.f32 %v560, %v644
    %v646 = vpop.f32.mrb[0].mxu0
    %v647 = vpop.f32.mrb[0].mxu0
    %v648 = vpop.f32.mrb[0].mxu0
    %649 = vdwg.mxu0
    %v650 = vmax.f32 %v645, 0.0
    %v651 = vpack.c.bf16 %v650, %v650
    %v652 = vld [vmem:[%s13] sm:$0xf]
    %v653 = vld [vmem:[%s13 + $0x4] sm:$0xf]
    %v654 = vld [vmem:[%s13 + $0x8] sm:$0xf]
    %v655 = vld [vmem:[%s13 + $0xc] sm:$0xf]
    %v656 = vld [vmem:[%s13 + $0x10] sm:$0xf]
    %v657 = vld [vmem:[%s13 + $0x14] sm:$0xf]
    %v658 = vld [vmem:[%s13 + $0x18] sm:$0xf]
    %v659 = vld [vmem:[%s13 + $0x1c] sm:$0xf]
    %v660 = vld [vmem:[%s13 + $0x20] sm:$0xf]
    %v661 = vld [vmem:[%s13 + $0x24] sm:$0xf]
    %v662 = vld [vmem:[%s13 + $0x28] sm:$0xf]
    %v663 = vld [vmem:[%s13 + $0x2c] sm:$0xf]
    %v664 = vld [vmem:[%s13 + $0x30] sm:$0xf]
    %v665 = vld [vmem:[%s13 + $0x34] sm:$0xf]
    %v666 = vld [vmem:[%s13 + $0x38] sm:$0xf]
    %v667 = vld [vmem:[%s13 + $0x3c] sm:$0xf]
    %v668 = vld [vmem:[%s14] sm:$0x1]
    %v670 = vlaneseq
    %v671 = vshrl.u32 %v670, 7
    %v672 = vsub.s32 0, %v671
    %v673 = vrot.slane %v668, %v672
    %v691 = vunpack.c.l.b16 %v652
    %v692 = vunpack.c.l.b16 %v653
    %v693 = vunpack.c.l.b16 %v654
    %v694 = vunpack.c.l.b16 %v655
    %v695 = vunpack.c.l.b16 %v656
    %v696 = vunpack.c.l.b16 %v657
    %v697 = vunpack.c.l.b16 %v658
    %v698 = vunpack.c.l.b16 %v659
    %v699 = vunpack.c.l.b16 %v660
    %v700 = vunpack.c.l.b16 %v661
    %v701 = vunpack.c.l.b16 %v662
    %v702 = vunpack.c.l.b16 %v663
    %v703 = vunpack.c.l.b16 %v664
    %v704 = vunpack.c.l.b16 %v665
    %v705 = vunpack.c.l.b16 %v666
    %v706 = vunpack.c.l.b16 %v667
    %v707 = vpack.c.b16 %v692, %v691
    %v708 = vpack.c.b16 %v694, %v693
    %v709 = vpack.c.b16 %v696, %v695
    %v710 = vpack.c.b16 %v698, %v697
    %v711 = vpack.c.b16 %v700, %v699
    %v712 = vpack.c.b16 %v702, %v701
    %v713 = vpack.c.b16 %v704, %v703
    %v714 = vpack.c.b16 %v706, %v705
    %723 = vmatprep.subr.bf16.mxu0 0
    %724 = vmatpush1.bf16.msra.mxu0 %v707
    %725 = vmatprep.subr.bf16.mxu0 0
    %726 = vmatpush1.bf16.msra.mxu0 %v708
    %727 = vmatprep.subr.bf16.mxu0 0
    %728 = vmatpush1.bf16.msra.mxu0 %v709
    %729 = vmatprep.subr.bf16.mxu0 0
    %730 = vmatpush1.bf16.msra.mxu0 %v710
    %731 = vmatprep.subr.bf16.mxu0 0
    %732 = vmatpush1.bf16.msra.mxu0 %v711
    %733 = vmatprep.subr.bf16.mxu0 0
    %734 = vmatpush1.bf16.msra.mxu0 %v712
    %735 = vmatprep.subr.bf16.mxu0 0
    %736 = vmatpush1.bf16.msra.mxu0 %v713
    %737 = vmatprep.subr.bf16.mxu0 0
    %738 = vmatpush1.bf16.msra.mxu0 %v714
    %739 = vmatprep.subr.bf16.mxu0 0
    %740 = vmatpush1.bf16.msra.mxu0 0
    %741 = vmatprep.subr.bf16.mxu0 0
    %742 = vmatpush1.bf16.msra.mxu0 0
    %743 = vmatprep.subr.bf16.mxu0 0
    %744 = vmatpush1.bf16.msra.mxu0 0
    %745 = vmatprep.subr.bf16.mxu0 0
    %746 = vmatpush1.bf16.msra.mxu0 0
    %747 = vmatprep.subr.bf16.mxu0 0
    %748 = vmatpush1.bf16.msra.mxu0 0
    %749 = vmatprep.subr.bf16.mxu0 0
    %750 = vmatpush1.bf16.msra.mxu0 0
    %751 = vmatprep.subr.bf16.mxu0 0
    %752 = vmatpush1.bf16.msra.mxu0 0
    %753 = vmatprep.subr.bf16.mxu0 0
    %754 = vmatpush1.bf16.msra.mxu0 0
    %755 = vmatprep.mubr.bf16.mxu0 0
    %756 = vmatmul.mubr.bf16.gmra.mrb[0].mxu0 %v651
    %v757 = vpop.f32.mrb[0].mxu0
    %v758 = vadd.f32 %v673, %v757
    %v759 = vpop.f32.mrb[0].mxu0
    %v760 = vpop.f32.mrb[0].mxu0
    %v761 = vpop.f32.mrb[0].mxu0
    %762 = vdwg.mxu0
    %v763 = vmax.f32 %v758, 0.0
    %v764 = vpack.c.bf16 %v763, %v763
    %v765 = vld [vmem:[#allocation15] sm:$0xf]
    %v766 = vld [vmem:[#allocation15 + $0x4] sm:$0xf]
    %v767 = vld [vmem:[#allocation15 + $0x8] sm:$0xf]
    %v768 = vld [vmem:[#allocation15 + $0xc] sm:$0xf]
    %v769 = vld [vmem:[#allocation15 + $0x10] sm:$0xf]
    %v770 = vld [vmem:[#allocation15 + $0x14] sm:$0xf]
    %v771 = vld [vmem:[#allocation15 + $0x18] sm:$0xf]
    %v772 = vld [vmem:[#allocation15 + $0x1c] sm:$0xf]
    %v773 = vld [vmem:[%s16] sm:$0x1]
    %v775 = vlaneseq
    %v776 = vshrl.u32 %v775, 7
    %v777 = vsub.s32 0, %v776
    %v778 = vrot.slane %v773, %v777
    %v788 = vunpack.c.l.b16 %v765
    %v789 = vunpack.c.l.b16 %v766
    %v790 = vunpack.c.l.b16 %v767
    %v791 = vunpack.c.l.b16 %v768
    %v792 = vunpack.c.l.b16 %v769
    %v793 = vunpack.c.l.b16 %v770
    %v794 = vunpack.c.l.b16 %v771
    %v795 = vunpack.c.l.b16 %v772
    %v796 = vpack.c.b16 %v789, %v788
    %v797 = vpack.c.b16 %v791, %v790
    %v798 = vpack.c.b16 %v793, %v792
    %v799 = vpack.c.b16 %v795, %v794
    %v805 = vsel %vm264, %v764, 0
    %807 = vmatprep.subr.bf16.mxu0 0
    %808 = vmatpush1.bf16.msra.mxu0 %v796
    %809 = vmatprep.subr.bf16.mxu0 0
    %810 = vmatpush1.bf16.msra.mxu0 %v797
    %811 = vmatprep.subr.bf16.mxu0 0
    %812 = vmatpush1.bf16.msra.mxu0 %v798
    %813 = vmatprep.subr.bf16.mxu0 0
    %814 = vmatpush1.bf16.msra.mxu0 %v799
    %815 = vmatprep.subr.bf16.mxu0 0
    %816 = vmatpush1.bf16.msra.mxu0 0
    %817 = vmatprep.subr.bf16.mxu0 0
    %818 = vmatpush1.bf16.msra.mxu0 0
    %819 = vmatprep.subr.bf16.mxu0 0
    %820 = vmatpush1.bf16.msra.mxu0 0
    %821 = vmatprep.subr.bf16.mxu0 0
    %822 = vmatpush1.bf16.msra.mxu0 0
    %823 = vmatprep.subr.bf16.mxu0 0
    %824 = vmatpush1.bf16.msra.mxu0 0
    %825 = vmatprep.subr.bf16.mxu0 0
    %826 = vmatpush1.bf16.msra.mxu0 0
    %827 = vmatprep.subr.bf16.mxu0 0
    %828 = vmatpush1.bf16.msra.mxu0 0
    %829 = vmatprep.subr.bf16.mxu0 0
    %830 = vmatpush1.bf16.msra.mxu0 0
    %831 = vmatprep.subr.bf16.mxu0 0
    %832 = vmatpush1.bf16.msra.mxu0 0
    %833 = vmatprep.subr.bf16.mxu0 0
    %834 = vmatpush1.bf16.msra.mxu0 0
    %835 = vmatprep.subr.bf16.mxu0 0
    %836 = vmatpush1.bf16.msra.mxu0 0
    %837 = vmatprep.subr.bf16.mxu0 0
    %838 = vmatpush1.bf16.msra.mxu0 0
    %839 = vmatprep.mubr.bf16.mxu0 0
    %840 = vmatmul.mubr.bf16.gmra.mrb[0].mxu0 %v805
    %v841 = vpop.f32.mrb[0].mxu0
    %v842 = vadd.f32 %v778, %v841
    %v843 = vpop.f32.mrb[0].mxu0
    %v844 = vpop.f32.mrb[0].mxu0
    %v845 = vpop.f32.mrb[0].mxu0
    %846 = vdwg.mxu0
    %v847 = vadd.f32 %v842, %v416
    %848 = vst [vmem:[#allocation16] sm:$0xff] %v847
    // Predicated region
    $region94: #{tpu_custom_call.1} parent=1 // pred_check
      _
    $region95: #{tpu_custom_call.1} parent=1 // pred_check_branch
      %850 = sbr.rel (0) target = $region97
    $region96: #{tpu_custom_call.1} parent=1 // pred_region
      %s852 = ssub.s32 128, 128
      %853 = vsyncadd [#allocation6], %s852
      %s855 = sshll.u32 [#allocation16], 4
      %s856 = int_to_ptr.vmem [resolvable:$true] %s855
      %858 = dma.vmem_to_hbm [thread:$0]  %s856, 128, %s17, [#allocation6]
    $region97: #{tpu_custom_call.1} parent=1 // pred_fallthru
      _
    // Predicated region
    $region98: #{tpu_custom_call.1} parent=1 // pred_check
      _
    $region99: #{tpu_custom_call.1} parent=1 // pred_check_branch
      %860 = sbr.rel (0) target = $region101
    $region100: #{tpu_custom_call.1} parent=1 // pred_region
      %861 = dma.done [#allocation6], 128
    $region101: #{tpu_custom_call.1} parent=1 // pred_fallthru
      _
    %862 = vsyncpa [#allocation5], 1
    %863 = vsyncpa [#allocation8], 1
    %864 = vsyncpa [#allocation11], 1
    %865 = vsyncpa [#allocation14], 1
    %866 = vsyncpa [#allocation6], 1

</llo_original>
